<compile_context>
chip_gen: v7x
topology: tpu7x:2x2x1
jax: 0.10.0
libtpu: 0.0.40
codegen_flags: <defaults>
</compile_context>

<pallas_src>
import jax
import jax.numpy as jnp
from jax import lax
from jax.experimental import pallas as pl
from jax.experimental.pallas import tpu as pltpu

EPS = 1e-5


def _round_up(x, m):
    return ((x + m - 1) // m) * m


def _layernorm_cf_kernel(x_ref, g_ref, b_ref, o_ref):
    # x_ref: (C, S_TILE) block (channels on sublanes, spatial on lanes)
    # g_ref / b_ref: (C, 1)  -> broadcast along lanes
    x = x_ref[...].astype(jnp.float32)
    c = x.shape[0]
    inv_c = 1.0 / c
    # Single-pass statistics over the channel (sublane) axis.
    s1 = jnp.sum(x, axis=0, keepdims=True) * inv_c          # E[x]
    s2 = jnp.sum(x * x, axis=0, keepdims=True) * inv_c      # E[x^2]
    var = jnp.maximum(s2 - s1 * s1, 0.0)                    # biased var, clamped
    inv = lax.rsqrt(var + EPS)
    g = g_ref[...].astype(jnp.float32)                      # (C, 1)
    b = b_ref[...].astype(jnp.float32)                      # (C, 1)
    y = (x - s1) * inv * g + b
    o_ref[...] = y.astype(o_ref.dtype)


def norm_forward(x, gamma, beta, *, lane_tile_target=2048):
    """LayerNorm over the channel dim of x: (B, C, H, W, T) -> same shape.

    Normalizes directly in the channels-first layout (no transposes): the
    kernel sees (C, S_TILE) tiles with spatial on the lane axis.
    """
    B, C, H, W, T = x.shape
    S = H * W * T
    x3 = x.reshape(B, C, S)

    # Lane tile: large (to amortize per-step overhead) but capped so small
    # inputs are not over-padded; always a multiple of 128 lanes.
    s_tile = min(lane_tile_target, _round_up(S, 128))
    S_pad = _round_up(S, s_tile)
    if S_pad != S:
        x3 = jnp.pad(x3, ((0, 0), (0, 0), (0, S_pad - S)))

    g2 = gamma.reshape(C, 1)
    b2 = beta.reshape(C, 1)

    y3 = pl.pallas_call(
        _layernorm_cf_kernel,
        out_shape=jax.ShapeDtypeStruct((B, C, S_pad), x.dtype),
        grid_spec=pltpu.PrefetchScalarGridSpec(
            num_scalar_prefetch=0,
            grid=(B, S_pad // s_tile),
            in_specs=[
                # Batch dim squeezed -> kernel ref is (C, s_tile).
                pl.BlockSpec((None, C, s_tile), lambda bi, si: (bi, 0, si)),
                pl.BlockSpec((C, 1), lambda bi, si: (0, 0)),
                pl.BlockSpec((C, 1), lambda bi, si: (0, 0)),
            ],
            out_specs=pl.BlockSpec((None, C, s_tile), lambda bi, si: (bi, 0, si)),
        ),
        compiler_params=pltpu.CompilerParams(
            dimension_semantics=("parallel", "parallel"),
            # Blocks are small; this is just explicit headroom for the
            # double-buffered in/out pipeline on all generations (incl. v7x).
            vmem_limit_bytes=32 * 1024 * 1024,
        ),
    )(x3, g2, b2)

    if S_pad != S:
        y3 = y3[:, :, :S]
    return y3.reshape(B, C, H, W, T)


if __name__ == "__main__":
    # Small shapes consistent with the module: B=2, C=embedding_dim=32, H=4, W=4, T=8
    B, C, H, W, T = 2, 32, 4, 4, 8
    key = jax.random.PRNGKey(0)
    x = jax.random.normal(key, (B, C, H, W, T), dtype=jnp.float32)

    # nn.LayerNorm default init: weight = ones, bias = zeros (kept generic).
    gamma = jnp.ones((C,), dtype=jnp.float32)
    beta = jnp.zeros((C,), dtype=jnp.float32)

    out = norm_forward(x, gamma, beta)
    out = jax.block_until_ready(out)

    # Reference check in plain JAX (channels-first, reduce over axis=1).
    mean = jnp.mean(x, axis=1, keepdims=True)
    var = jnp.mean((x - mean) ** 2, axis=1, keepdims=True)
    ref = (x - mean) / jnp.sqrt(var + EPS)
    ref = ref * gamma.reshape(1, C, 1, 1, 1) + beta.reshape(1, C, 1, 1, 1)

    assert out.shape == x.shape
    assert jnp.max(jnp.abs(out - ref)) < 1e-4

    print("KERNEL_OK")
</pallas_src>

<mosaic_0001>
module attributes {stable_mosaic.version = 11 : i64} {
  func.func @_layernorm_cf_kernel(%arg0: i32, %arg1: i32, %arg2: memref<1x32x128xf32, #tpu.memory_space<vmem>>, %arg3: memref<32x1xf32, #tpu.memory_space<vmem>>, %arg4: memref<32x1xf32, #tpu.memory_space<vmem>>, %arg5: memref<1x32x128xf32, #tpu.memory_space<vmem>>) attributes {dimension_semantics = [#tpu.dimension_semantics<parallel>, #tpu.dimension_semantics<parallel>], iteration_bounds = array<i64: 2, 1>, scalar_prefetch = 0 : i64, scratch_operands = 0 : i64, tpu.core_type = #tpu.core_type<tc>, window_params = [{transform_indices = @transform_0, window_bounds = array<i64: 1, 32, 128>}, {pipeline_mode = #tpu.pipeline_mode<synchronous>, transform_indices = @transform_1, window_bounds = array<i64: 32, 1>}, {pipeline_mode = #tpu.pipeline_mode<synchronous>, transform_indices = @transform_2, window_bounds = array<i64: 32, 1>}, {transform_indices = @transform_3, window_bounds = array<i64: 1, 32, 128>}]} {
    %c0 = arith.constant 0 : index
    %c0_0 = arith.constant 0 : index
    %c0_1 = arith.constant 0 : index
    %0 = vector.load %arg2[%c0, %c0_0, %c0_1] : memref<1x32x128xf32, #tpu.memory_space<vmem>>, vector<1x32x128xf32>
    %1 = vector.shape_cast %0 : vector<1x32x128xf32> to vector<32x128xf32>
    %cst = arith.constant dense<0.000000e+00> : vector<128xf32>
    %2 = vector.multi_reduction <add>, %1, %cst [0] : vector<32x128xf32> to vector<128xf32>
    %3 = vector.shape_cast %2 : vector<128xf32> to vector<1x128xf32>
    %cst_2 = arith.constant 3.125000e-02 : f32
    %4 = vector.broadcast %cst_2 : f32 to vector<1x128xf32>
    %5 = arith.mulf %3, %4 : vector<1x128xf32>
    %6 = arith.mulf %1, %1 : vector<32x128xf32>
    %cst_3 = arith.constant dense<0.000000e+00> : vector<128xf32>
    %7 = vector.multi_reduction <add>, %6, %cst_3 [0] : vector<32x128xf32> to vector<128xf32>
    %8 = vector.shape_cast %7 : vector<128xf32> to vector<1x128xf32>
    %cst_4 = arith.constant 3.125000e-02 : f32
    %9 = vector.broadcast %cst_4 : f32 to vector<1x128xf32>
    %10 = arith.mulf %8, %9 : vector<1x128xf32>
    %11 = arith.mulf %5, %5 : vector<1x128xf32>
    %12 = arith.subf %10, %11 : vector<1x128xf32>
    %cst_5 = arith.constant 0.000000e+00 : f32
    %13 = vector.broadcast %cst_5 : f32 to vector<1x128xf32>
    %14 = arith.maximumf %12, %13 : vector<1x128xf32>
    %cst_6 = arith.constant 9.99999974E-6 : f32
    %15 = vector.broadcast %cst_6 : f32 to vector<1x128xf32>
    %16 = arith.addf %14, %15 : vector<1x128xf32>
    %17 = math.rsqrt %16 : vector<1x128xf32>
    %c0_7 = arith.constant 0 : index
    %c0_8 = arith.constant 0 : index
    %18 = vector.load %arg3[%c0_7, %c0_8] : memref<32x1xf32, #tpu.memory_space<vmem>>, vector<32x1xf32>
    %c0_9 = arith.constant 0 : index
    %c0_10 = arith.constant 0 : index
    %19 = vector.load %arg4[%c0_9, %c0_10] : memref<32x1xf32, #tpu.memory_space<vmem>>, vector<32x1xf32>
    %20 = vector.broadcast %5 : vector<1x128xf32> to vector<32x128xf32>
    %21 = arith.subf %1, %20 : vector<32x128xf32>
    %22 = vector.broadcast %17 : vector<1x128xf32> to vector<32x128xf32>
    %23 = arith.mulf %21, %22 : vector<32x128xf32>
    %24 = vector.broadcast %18 : vector<32x1xf32> to vector<32x128xf32>
    %25 = arith.mulf %23, %24 : vector<32x128xf32>
    %26 = vector.broadcast %19 : vector<32x1xf32> to vector<32x128xf32>
    %27 = arith.addf %25, %26 : vector<32x128xf32>
    %c0_11 = arith.constant 0 : index
    %c0_12 = arith.constant 0 : index
    %c0_13 = arith.constant 0 : index
    %28 = vector.load %arg5[%c0_11, %c0_12, %c0_13] : memref<1x32x128xf32, #tpu.memory_space<vmem>>, vector<1x32x128xf32>
    %29 = vector.shape_cast %28 : vector<1x32x128xf32> to vector<32x128xf32>
    %30 = vector.shape_cast %27 : vector<32x128xf32> to vector<1x32x128xf32>
    tpu.vector_store %arg5[%c0_11, %c0_12, %c0_13], %30 {strides = array<i32>} : memref<1x32x128xf32, #tpu.memory_space<vmem>>, vector<1x32x128xf32>,
    return
  }
  func.func @transform_0(%arg0: i32, %arg1: i32) -> (i32, i32, i32) {
    %c0_i32 = arith.constant 0 : i32
    %c0_i32_0 = arith.constant 0 : i32
    return %arg0, %c0_i32, %arg1 : i32, i32, i32
  }
  func.func @transform_1(%arg0: i32, %arg1: i32) -> (i32, i32) {
    %c0_i32 = arith.constant 0 : i32
    %c0_i32_0 = arith.constant 0 : i32
    %c0_i32_1 = arith.constant 0 : i32
    return %c0_i32, %c0_i32_0 : i32, i32
  }
  func.func @transform_2(%arg0: i32, %arg1: i32) -> (i32, i32) {
    %c0_i32 = arith.constant 0 : i32
    %c0_i32_0 = arith.constant 0 : i32
    %c0_i32_1 = arith.constant 0 : i32
    return %c0_i32, %c0_i32_0 : i32, i32
  }
  func.func @transform_3(%arg0: i32, %arg1: i32) -> (i32, i32, i32) {
    %c0_i32 = arith.constant 0 : i32
    %c0_i32_0 = arith.constant 0 : i32
    return %arg0, %c0_i32, %arg1 : i32, i32, i32
  }
}

</mosaic_0001>

<llo_original>
// kernel: tpu_custom_call.1
$region0: #{tpu_custom_call.1}
  #allocation0 [shape = 'u32[]', space=smem, size = 0x4, offset = 0x4, fixed_abs, tag = 'smem constant byte address 0x4 - core index']
  #allocation1 [shape = 'u32[144,128]{1,0:T(1,128)}', space=vmem, size = 0x12000, scoped, tag = 'internal scratch']
  %s0 = inlined_call_operand.vmem [shape: f32[2,32,128], index: 0, kind: input, shape index: {}]
  %s1 = inlined_call_operand.vmem [shape: f32[32,1], index: 1, kind: input, shape index: {}]
  %s2 = inlined_call_operand.vmem [shape: f32[32,1], index: 2, kind: input, shape index: {}]
  %s3 = inlined_call_operand.hbm [shape: f32[2,32,128], index: 3, kind: output, shape index: {}]
  %s4 = sld [smem:[#allocation0]]
  $region45: #{tpu_custom_call.1} parent=0
    _
  %s6 = ssub.s32 1, %s4
  %s7 = scalar_select 0, %s6, %s4
  $region1: #{tpu_custom_call.1} parent=0
    #allocation2 [shape = 'u8[32768]{0}', space=vmem, size = 0x8000, scoped, tag = 'output window, operand 0']
    #allocation3 [shape = 's32[2]{0}', space=sflag, size = 0x8, scoped, tag = 'scoped memory for tpu_custom_call.1']
    %8 = vsyncpa [#allocation3], 0
    %s9 = scalar_lea.sflag [#allocation3], 1
    %10 = vsyncpa %s9, 0
    loop: start=0, step=1, limit=4
    $region2: #{tpu_custom_call.1} parent=1 // loop_pre_header
      _
    $region3: #{tpu_custom_call.1} parent=1 // loop_header
      %s12 = sphi 0, %s16
      %p13 = scmp.ge.s32.totalorder %s12, 4
      %s19 = sphi 0, %s31
      %s20 = sphi 0, %s27
      %s21 = sphi 0, %s19
      %s22 = sphi 0, %s20
      %s23 = sphi 0, %s21
      %s24 = sphi 0, %s22
      %s36 = sphi 0, %s38
      %s39 = sphi 0, %s36
      %s40 = sphi 0, %s39
      %s56 = sphi 0, %s40
      %s60 = sphi 0, %s60
      %s62 = sphi 0, %s60
      %s63 = sphi 0, %s62
      %s77 = sphi 0, %s63
      %s81 = sphi 0, %s81
      %s83 = sphi 0, %s81
      %s84 = sphi 0, %s83
      %s98 = sphi 0, %s84
      %s106 = sphi 0, %s108
      %s109 = sphi 0, %s106
      %s110 = sphi 0, %s109
      %s126 = sphi 0, %s110
    $region4: #{tpu_custom_call.1} parent=1 // loop_header_branch
      %15 = sbr.rel (%p13) target = $region8
    $region5: #{tpu_custom_call.1} parent=1 // loop_body
      %s17 = ssub.s32 %s12, 1
      %s18 = ssub.s32 %s12, 2
      %s25 = sadd.s32 1, %s20
      %p26 = scmp.ge.s32.totalorder %s25, 1
      %s27 = scalar_select %p26, 0, %s25
      %s28 = sadd.s32 1, %s19
      %s29 = scalar_select %p26, %s28, %s19
      %p30 = scmp.ge.s32.totalorder %s29, 2
      %s31 = scalar_select %p30, 0, %s29
      %s32 = ssub.s32 %s19, %s31
      %s33 = ssub.s32 %s20, %s27
      %s34 = sor.u32 %s32, %s33
      %p35 = scmp.eq.s32.totalorder %s34, 0
      %s37 = sadd.s32 %s36, 1
      %s38 = scalar_select %p35, %s36, %s37
      %p41 = pneg %p35
      %p42 = scmp.eq.s32.totalorder %s12, 1
      %p43 = por %p41, %p42
      %p44 = scmp.ne.s32.totalorder %s36, %s39
      %p45 = scmp.eq.s32.totalorder %s12, 0
      %p46 = por %p44, %p45
      %p47 = scmp.ne.s32.totalorder %s36, %s39
      %p48 = scmp.eq.s32.totalorder %s17, 1
      %p49 = por %p47, %p48
      %p50 = scmp.ne.s32.totalorder %s39, %s40
      %p51 = scmp.eq.s32.totalorder %s17, 0
      %p52 = por %p50, %p51
      %p53 = scmp.ne.s32.totalorder %s39, %s40
      %p54 = scmp.eq.s32.totalorder %s18, 1
      %p55 = por %p53, %p54
      %p57 = scmp.ne.s32.totalorder %s40, %s56
      %p58 = scmp.eq.s32.totalorder %s18, 0
      %p59 = por %p57, %p58
      %s61 = sadd.s32 %s60, 1
      %p64 = scmp.eq.s32.totalorder %s12, 1
      %p65 = scmp.ne.s32.totalorder %s60, %s62
      %p66 = scmp.eq.s32.totalorder %s12, 0
      %p67 = por %p65, %p66
      %p68 = scmp.ne.s32.totalorder %s60, %s62
      %p69 = scmp.eq.s32.totalorder %s17, 1
      %p70 = por %p68, %p69
      %p71 = scmp.ne.s32.totalorder %s62, %s63
      %p72 = scmp.eq.s32.totalorder %s17, 0
      %p73 = por %p71, %p72
      %p74 = scmp.ne.s32.totalorder %s62, %s63
      %p75 = scmp.eq.s32.totalorder %s18, 1
      %p76 = por %p74, %p75
      %p78 = scmp.ne.s32.totalorder %s63, %s77
      %p79 = scmp.eq.s32.totalorder %s18, 0
      %p80 = por %p78, %p79
      %s82 = sadd.s32 %s81, 1
      %p85 = scmp.eq.s32.totalorder %s12, 1
      %p86 = scmp.ne.s32.totalorder %s81, %s83
      %p87 = scmp.eq.s32.totalorder %s12, 0
      %p88 = por %p86, %p87
      %p89 = scmp.ne.s32.totalorder %s81, %s83
      %p90 = scmp.eq.s32.totalorder %s17, 1
      %p91 = por %p89, %p90
      %p92 = scmp.ne.s32.totalorder %s83, %s84
      %p93 = scmp.eq.s32.totalorder %s17, 0
      %p94 = por %p92, %p93
      %p95 = scmp.ne.s32.totalorder %s83, %s84
      %p96 = scmp.eq.s32.totalorder %s18, 1
      %p97 = por %p95, %p96
      %p99 = scmp.ne.s32.totalorder %s84, %s98
      %p100 = scmp.eq.s32.totalorder %s18, 0
      %p101 = por %p99, %p100
      %s102 = ssub.s32 %s19, %s31
      %s103 = ssub.s32 %s20, %s27
      %s104 = sor.u32 %s102, %s103
      %p105 = scmp.eq.s32.totalorder %s104, 0
      %s107 = sadd.s32 %s106, 1
      %s108 = scalar_select %p105, %s106, %s107
      %p111 = pneg %p105
      %p112 = scmp.eq.s32.totalorder %s12, 1
      %p113 = por %p111, %p112
      %p114 = scmp.ne.s32.totalorder %s106, %s109
      %p115 = scmp.eq.s32.totalorder %s12, 0
      %p116 = por %p114, %p115
      %p117 = scmp.ne.s32.totalorder %s106, %s109
      %p118 = scmp.eq.s32.totalorder %s17, 1
      %p119 = por %p117, %p118
      %p120 = scmp.ne.s32.totalorder %s109, %s110
      %p121 = scmp.eq.s32.totalorder %s17, 0
      %p122 = por %p120, %p121
      %p123 = scmp.ne.s32.totalorder %s109, %s110
      %p124 = scmp.eq.s32.totalorder %s18, 1
      %p125 = por %p123, %p124
      %p127 = scmp.ne.s32.totalorder %s110, %s126
      %p128 = scmp.eq.s32.totalorder %s18, 0
      %p129 = por %p127, %p128
      %p130 = scmp.le.s32.totalorder 1, %s12
      %p131 = scmp.lt.s32.totalorder %s12, 3
      %p132 = pnand %p130, %p131
      %p133 = pneg %p132
      // Predicated region
      $region9: #{tpu_custom_call.1} parent=5 // pred_check
        _
      $region10: #{tpu_custom_call.1} parent=5 // pred_check_branch
        %135 = sbr.rel (%p132) target = $region12
      $region11: #{tpu_custom_call.1} parent=5 // pred_region
        %s136 = ssub.s32 %s12, 1
        // Predicated region
        $region13: #{tpu_custom_call.1} parent=11 // pred_check
          %p137 = pneg %p73
        $region14: #{tpu_custom_call.1} parent=11 // pred_check_branch
          %139 = sbr.rel (%p137) target = $region16
        $region15: #{tpu_custom_call.1} parent=11 // pred_region
          _
        $region16: #{tpu_custom_call.1} parent=11 // pred_fallthru
          _
        // Predicated region
        $region17: #{tpu_custom_call.1} parent=11 // pred_check
          %p140 = pneg %p94
        $region18: #{tpu_custom_call.1} parent=11 // pred_check_branch
          %142 = sbr.rel (%p140) target = $region20
        $region19: #{tpu_custom_call.1} parent=11 // pred_region
          _
        $region20: #{tpu_custom_call.1} parent=11 // pred_fallthru
          _
      $region12: #{tpu_custom_call.1} parent=5 // pred_fallthru
        _
      %p143 = scmp.lt.s32.totalorder %s12, 2
      // Predicated region
      $region21: #{tpu_custom_call.1} parent=5 // pred_check
        %p144 = pneg %p143
      $region22: #{tpu_custom_call.1} parent=5 // pred_check_branch
        %146 = sbr.rel (%p144) target = $region24
      $region23: #{tpu_custom_call.1} parent=5 // pred_region
        // Predicated region
        $region25: #{tpu_custom_call.1} parent=23 // pred_check
          %p147 = pneg %p46
        $region26: #{tpu_custom_call.1} parent=23 // pred_check_branch
          %149 = sbr.rel (%p147) target = $region28
        $region27: #{tpu_custom_call.1} parent=23 // pred_region
          %p150 = scmp.lt.s32.totalorder %s19, 1
          %s151 = scalar_select %p150, %s19, 1
          %p152 = scmp.lt.s32.totalorder %s20, 0
          %s153 = scalar_select %p152, %s20, 0
          %s154 = smul.addr %s151, 4
          %s155 = sadd.s32 %s153, %s154
          %s156 = smul.addr %s155, 8
          %s157 = scalar_lea.vmem %s0, %s156
        $region28: #{tpu_custom_call.1} parent=23 // pred_fallthru
          _
      $region24: #{tpu_custom_call.1} parent=5 // pred_fallthru
        _
      %p158 = scmp.le.s32.totalorder 1, %s12
      %p159 = scmp.lt.s32.totalorder %s12, 3
      %p160 = pnand %p158, %p159
      %p161 = pneg %p160
      // Predicated region
      $region29: #{tpu_custom_call.1} parent=5 // pred_check
        _
      $region30: #{tpu_custom_call.1} parent=5 // pred_check_branch
        %163 = sbr.rel (%p160) target = $region32
      $region31: #{tpu_custom_call.1} parent=5 // pred_region
        %s164 = ssub.s32 %s12, 1
        %p165 = scmp.lt.s32.totalorder %s21, 1
        %s166 = scalar_select %p165, %s21, 1
        %p167 = scmp.lt.s32.totalorder %s22, 0
        %s168 = scalar_select %p167, %s22, 0
        %s169 = smul.addr %s166, 4
        %s170 = sadd.s32 %s168, %s169
        %s171 = smul.addr %s170, 8
        %s172 = scalar_lea.vmem %s0, %s171
        %p173 = pneg %p52
        %p174 = pneg %p49
        %p175 = pneg %p73
        %p176 = pneg %p70
        %p177 = pneg %p94
        %p178 = pneg %p91
        %p179 = pneg %p122
        %p180 = pneg %p119
        %s181 = sand.u32 %s109, 1
        %s182 = scalar_lea.sflag [#allocation3], %s181
        %s183 = sand.u32 %s109, 1
        %s184 = smul.addr %s183, 32
        %s185 = scalar_lea.vmem [#allocation2], %s184
        %p186 = scmp.lt.s32.totalorder %s21, 1
        %s187 = scalar_select %p186, %s21, 1
        %p188 = scmp.lt.s32.totalorder %s22, 0
        %s189 = scalar_select %p188, %s22, 0
        %s190 = smul.addr %s187, 4
        %s191 = sadd.s32 %s189, %s190
        %s192 = smul.addr %s191, 8
        %s193 = scalar_lea.vmem %s0, %s192
        %v194 = vld [vmem:[%s193] sm:$0xff]
        %v195 = vld [vmem:[%s193 + $0x8] sm:$0xff]
        %v196 = vld [vmem:[%s193 + $0x10] sm:$0xff]
        %v197 = vld [vmem:[%s193 + $0x18] sm:$0xff]
        %v198 = vadd.f32 %v194, %v195
        %v199 = vadd.f32 %v198, %v196
        %v200 = vadd.f32 %v199, %v197
        %v201 = vrot.slane %v200, 4
        %v202 = vadd.f32 %v200, %v201
        %v203 = vrot.slane %v202, 2
        %v204 = vadd.f32 %v202, %v203
        %v205 = vrot.slane %v204, 1
        %v206 = vadd.f32 %v204, %v205
        %v207 = vmul.f32 %v206, 0.03125
        %v208 = vmul.f32 %v194, %v194
        %v209 = vmul.f32 %v195, %v195
        %v210 = vmul.f32 %v196, %v196
        %v211 = vmul.f32 %v197, %v197
        %v212 = vadd.f32 %v208, %v209
        %v213 = vadd.f32 %v212, %v210
        %v214 = vadd.f32 %v213, %v211
        %v215 = vrot.slane %v214, 4
        %v216 = vadd.f32 %v214, %v215
        %v217 = vrot.slane %v216, 2
        %v218 = vadd.f32 %v216, %v217
        %v219 = vrot.slane %v218, 1
        %v220 = vadd.f32 %v218, %v219
        %v221 = vmul.f32 %v220, 0.03125
        %v222 = vmul.f32 %v207, %v207
        %v223 = vsub.f32 %v221, %v222
        %v224 = vmax.f32 %v223, 0.0
        %v225 = vadd.f32 %v224, 1e-05
        %v226 = vrsqrt.pop %v225
        %v227 = vld [vmem:[%s1] sm:$0xff]
        %v228 = vld [vmem:[%s1 + $0x8] sm:$0xff]
        %v229 = vld [vmem:[%s1 + $0x10] sm:$0xff]
        %v230 = vld [vmem:[%s1 + $0x18] sm:$0xff]
        %v231 = vld [vmem:[%s2] sm:$0xff]
        %v232 = vld [vmem:[%s2 + $0x8] sm:$0xff]
        %v233 = vld [vmem:[%s2 + $0x10] sm:$0xff]
        %v234 = vld [vmem:[%s2 + $0x18] sm:$0xff]
        %v235 = vsub.f32 %v194, %v207
        %v236 = vsub.f32 %v195, %v207
        %v237 = vsub.f32 %v196, %v207
        %v238 = vsub.f32 %v197, %v207
        %v239 = vmul.f32 %v235, %v226
        %v240 = vmul.f32 %v236, %v226
        %v241 = vmul.f32 %v237, %v226
        %v242 = vmul.f32 %v238, %v226
        %244 = vset.pattern.permute.xlu0 0
        %245 = vperm.xlu0 %244, %v227
        %v246 = vpop.permute.xlu0 %245
        %249 = vset.pattern.permute.xlu0 0
        %250 = vperm.xlu0 %249, %v228
        %v251 = vpop.permute.xlu0 %250
        %254 = vset.pattern.permute.xlu0 0
        %255 = vperm.xlu0 %254, %v229
        %v256 = vpop.permute.xlu0 %255
        %259 = vset.pattern.permute.xlu0 0
        %260 = vperm.xlu0 %259, %v230
        %v261 = vpop.permute.xlu0 %260
        %v263 = vmul.f32 %v239, %v246
        %v264 = vmul.f32 %v240, %v251
        %v265 = vmul.f32 %v241, %v256
        %v266 = vmul.f32 %v242, %v261
        %268 = vset.pattern.permute.xlu0 0
        %269 = vperm.xlu0 %268, %v231
        %v270 = vpop.permute.xlu0 %269
        %273 = vset.pattern.permute.xlu0 0
        %274 = vperm.xlu0 %273, %v232
        %v275 = vpop.permute.xlu0 %274
        %278 = vset.pattern.permute.xlu0 0
        %279 = vperm.xlu0 %278, %v233
        %v280 = vpop.permute.xlu0 %279
        %283 = vset.pattern.permute.xlu0 0
        %284 = vperm.xlu0 %283, %v234
        %v285 = vpop.permute.xlu0 %284
        %v287 = vadd.f32 %v263, %v270
        %v288 = vadd.f32 %v264, %v275
        %v289 = vadd.f32 %v265, %v280
        %v290 = vadd.f32 %v266, %v285
        %291 = vst [vmem:[%s185] sm:$0xff] %v287
        %292 = vst [vmem:[%s185 + $0x8] sm:$0xff] %v288
        %293 = vst [vmem:[%s185 + $0x10] sm:$0xff] %v289
        %294 = vst [vmem:[%s185 + $0x18] sm:$0xff] %v290
        %s295 = sand.u32 %s109, 1
        %s296 = scalar_lea.sflag [#allocation3], %s295
        %s297 = sand.u32 %s109, 1
        %s298 = smul.addr %s297, 32
        %s299 = scalar_lea.vmem [#allocation2], %s298
        // Predicated region
        $region33: #{tpu_custom_call.1} parent=31 // pred_check
          %p300 = pneg %p119
        $region34: #{tpu_custom_call.1} parent=31 // pred_check_branch
          %302 = sbr.rel (%p300) target = $region36
        $region35: #{tpu_custom_call.1} parent=31 // pred_region
          %s304 = ssub.s32 512, 512
          %305 = vsyncadd %s296, %s304
          %s306 = smul.addr %s21, 4
          %s307 = sadd.s32 %s22, %s306
          %s308 = smul.addr %s307, 128
          %s309 = scalar_lea.hbm %s3, %s308
          %s310 = sshll.u32 %s299, 4
          %s311 = int_to_ptr.vmem [resolvable:$true] %s310
          %316 = dma.vmem_to_hbm [thread:$0]  %s311, 512, %s309, %s296, 128, 128, 8
        $region36: #{tpu_custom_call.1} parent=31 // pred_fallthru
          _
      $region32: #{tpu_custom_call.1} parent=5 // pred_fallthru
        _
      %p317 = scmp.le.s32.totalorder 2, %s12
      // Predicated region
      $region37: #{tpu_custom_call.1} parent=5 // pred_check
        %p318 = pneg %p317
      $region38: #{tpu_custom_call.1} parent=5 // pred_check_branch
        %320 = sbr.rel (%p318) target = $region40
      $region39: #{tpu_custom_call.1} parent=5 // pred_region
        %s321 = ssub.s32 %s12, 2
        // Predicated region
        $region41: #{tpu_custom_call.1} parent=39 // pred_check
          %p322 = pneg %p125
        $region42: #{tpu_custom_call.1} parent=39 // pred_check_branch
          %324 = sbr.rel (%p322) target = $region44
        $region43: #{tpu_custom_call.1} parent=39 // pred_region
          %s325 = sand.u32 %s110, 1
          %s326 = scalar_lea.sflag [#allocation3], %s325
          %s327 = sand.u32 %s110, 1
          %s328 = smul.addr %s327, 32
          %s329 = scalar_lea.vmem [#allocation2], %s328
          %330 = dma.done %s326, 512
        $region44: #{tpu_custom_call.1} parent=39 // pred_fallthru
          _
      $region40: #{tpu_custom_call.1} parent=5 // pred_fallthru
        _
    $region6: #{tpu_custom_call.1} parent=1 // loop_footer
      %s16 = sadd.s32 1, %s12
    $region7: #{tpu_custom_call.1} parent=1 // loop_footer_branch
      %11 = sbr.rel target = $region3
    $region8: #{tpu_custom_call.1} parent=1 // loop_exit
      _
    %331 = vsyncpa [#allocation3], 1
    %s332 = scalar_lea.sflag [#allocation3], 1
    %333 = vsyncpa %s332, 1

</llo_original>
